<compile_context>
chip_gen: v6e
topology: v6e:2x2x1
jax: 0.10.0
libtpu: 0.0.40
codegen_flags: <defaults>
</compile_context>

<pallas_src>
import jax
import jax.numpy as jnp
from jax.experimental import pallas as pl
from jax.experimental.pallas import tpu as pltpu


_LANES = 128          # vreg lane width
_ROWS = 16            # bf16 sublane packing: (16, 128) per packed vreg
_NEG_BIG = -1e30      # bias on padded action columns; exp(pad - max) == 0.0
                      # NOTE: must stay f32 (in bf16 it becomes -inf; exp is
                      # still 0, but keep it f32 so nobody "fixes" it to a
                      # smaller constant that no longer underflows).


def _round_up(x, m):
    return ((x + m - 1) // m) * m


def _policy_kernel(x_ref, w1_ref, b1_ref, w2_ref, b2_ref, out_ref):
    """matmul -> relu -> matmul -> softmax, fused in VMEM.

    x_ref is f32 streamed straight from HBM; the bf16 cast happens here on the
    VPU so the wrapper never re-materializes states.  Matmuls accumulate in
    f32 on the MXU; biases and softmax math stay f32.
    """
    x = x_ref[...].astype(w1_ref.dtype)
    h = jnp.dot(x, w1_ref[...], preferred_element_type=jnp.float32) + b1_ref[...]
    h = jnp.maximum(h, 0.0).astype(w2_ref.dtype)

    logits = jnp.dot(h, w2_ref[...], preferred_element_type=jnp.float32) + b2_ref[...]

    # Softmax over the lane-padded action axis.  Padded columns carry a -1e30
    # bias, so exp(pad - m) == 0 exactly and the denominator equals the sum
    # over the real actions.
    m = jnp.max(logits, axis=-1, keepdims=True)
    e = jnp.exp(logits - m)
    denom = jnp.sum(e, axis=-1, keepdims=True)
    probs = e / denom          # exact normalization: rows sum to 1

    # Only the real action columns are written back (16x less output DMA for
    # num_actions=8; the padded columns are exactly 0 anyway).
    out_ref[...] = probs[:, : out_ref.shape[1]].astype(out_ref.dtype)


def prepare_policy_params(w1, b1, w2, b2, *, compute_dtype=jnp.bfloat16):
    """One-time parameter prep (bf16 cast + action-axis lane padding).

    Keep the result around; re-running this per forward call would re-pay an
    HBM pass over the weights.
    """
    num_actions = w2.shape[1]
    na_pad = _round_up(num_actions, _LANES)
    w2p = w2.astype(jnp.float32)
    b2p = b2.astype(jnp.float32).reshape(1, num_actions)
    if na_pad != num_actions:
        w2p = jnp.pad(w2p, ((0, 0), (0, na_pad - num_actions)))
        b2p = jnp.pad(b2p, ((0, 0), (0, na_pad - num_actions)),
                      constant_values=_NEG_BIG)
    return dict(
        w1=w1.astype(compute_dtype),
        b1=b1.astype(jnp.float32).reshape(1, -1),
        w2=w2p.astype(compute_dtype),   # zero-padded columns stay exactly 0
        b2=b2p,                         # stays f32 (holds the -1e30 pad bias)
        num_actions=num_actions,
    )


def _choose_batch_tile(batch, requested):
    # 16-row granularity (bf16 packs (16,128) per vreg pair); large tiles
    # amortize the ~0.35us per-grid-step overhead.
    tile = max(_ROWS, min(requested, _round_up(batch, _ROWS)))
    # v7x megacore: once there is real work, cap the tile so the "parallel"
    # batch axis has >= 2 steps and both TensorCores get a share.
    if batch > 1024:
        tile = min(tile, _round_up(-(-batch // 2), _ROWS))
    return tile


def discrete_gaussian_policy_forward(states, params, *, batch_tile=1024):
    """Action probabilities, shape (B, num_actions), float32 rows summing to 1."""
    B, state_dim = states.shape
    w1, b1, w2, b2 = params["w1"], params["b1"], params["w2"], params["b2"]
    num_actions = params["num_actions"]
    hidden = w1.shape[1]
    na_pad = w2.shape[1]

    tile = _choose_batch_tile(B, batch_tile)
    grid = (pl.cdiv(B, tile),)   # ragged last block: Pallas masks reads/stores

    flops = 2 * B * (state_dim * hidden + hidden * na_pad)
    bytes_accessed = (states.size * states.dtype.itemsize
                      + w1.size * w1.dtype.itemsize
                      + w2.size * w2.dtype.itemsize
                      + b1.size * 4 + b2.size * 4
                      + B * num_actions * 4)
    cost = pl.CostEstimate(flops=flops, transcendentals=B * na_pad,
                           bytes_accessed=bytes_accessed)

    return pl.pallas_call(
        _policy_kernel,
        out_shape=jax.ShapeDtypeStruct((B, num_actions), jnp.float32),
        grid_spec=pltpu.PrefetchScalarGridSpec(
            num_scalar_prefetch=0,
            grid=grid,
            in_specs=[
                pl.BlockSpec((tile, state_dim), lambda i: (i, 0)),    # states (f32)
                pl.BlockSpec((state_dim, hidden), lambda i: (0, 0)),  # W1 (resident bf16)
                pl.BlockSpec((1, hidden), lambda i: (0, 0)),          # b1 (f32)
                pl.BlockSpec((hidden, na_pad), lambda i: (0, 0)),     # W2 (lane-padded bf16)
                pl.BlockSpec((1, na_pad), lambda i: (0, 0)),          # b2 (lane-padded f32)
            ],
            out_specs=pl.BlockSpec((tile, num_actions), lambda i: (i, 0)),
        ),
        compiler_params=pltpu.CompilerParams(
            dimension_semantics=("parallel",),
            # Explicit budget: resident weights + double-buffered states/out
            # tiles + f32 intermediates are only ~3 MiB at tile=1024 for these
            # shapes; 32 MiB leaves headroom on every generation.  Re-derive
            # if hidden / num_actions grow (v7x has 64 MiB physical VMEM).
            vmem_limit_bytes=32 * 1024 * 1024,
        ),
        cost_estimate=cost,
    )(states, w1, b1, w2, b2)


def _reference_forward(states, w1, b1, w2, b2, compute_dtype=jnp.bfloat16):
    # Mirrors the kernel's mixed-precision path (bf16 operands, f32 accumulate).
    x = states.astype(compute_dtype)
    h = jnp.dot(x, w1.astype(compute_dtype),
                preferred_element_type=jnp.float32) + b1.astype(jnp.float32)
    h = jnp.maximum(h, 0.0).astype(compute_dtype)
    logits = jnp.dot(h, w2.astype(compute_dtype),
                     preferred_element_type=jnp.float32) + b2.astype(jnp.float32)
    return jax.nn.softmax(logits, axis=1)


if __name__ == "__main__":
    # Small, MLP-consistent shapes: batch=8, state_dim=32, hidden=128, actions=8
    B, STATE_DIM, HIDDEN, NUM_ACTIONS = 8, 32, 128, 8

    key = jax.random.PRNGKey(0)
    k_x, k_w1, k_b1, k_w2, k_b2 = jax.random.split(key, 5)

    states = jax.random.normal(k_x, (B, STATE_DIM), dtype=jnp.float32)
    w1 = jax.random.normal(k_w1, (STATE_DIM, HIDDEN), dtype=jnp.float32) / jnp.sqrt(STATE_DIM)
    b1 = jax.random.normal(k_b1, (1, HIDDEN), dtype=jnp.float32) * 0.01
    w2 = jax.random.normal(k_w2, (HIDDEN, NUM_ACTIONS), dtype=jnp.float32) / jnp.sqrt(HIDDEN)
    b2 = jax.random.normal(k_b2, (1, NUM_ACTIONS), dtype=jnp.float32) * 0.01

    params = prepare_policy_params(w1, b1, w2, b2)   # one-time cast / lane-pad

    action_probs = jax.block_until_ready(
        discrete_gaussian_policy_forward(states, params))

    ref_mixed = _reference_forward(states, w1, b1, w2, b2, jnp.bfloat16)
    ref_f32 = _reference_forward(states, w1, b1, w2, b2, jnp.float32)

    assert action_probs.shape == (B, NUM_ACTIONS)
    assert bool(jnp.all(jnp.abs(action_probs.sum(axis=1) - 1.0) < 1e-3))
    assert jnp.allclose(action_probs, ref_mixed, atol=2e-3, rtol=2e-3)
    assert jnp.allclose(action_probs, ref_f32, atol=3e-2, rtol=3e-2)

    # Ragged batch (not a multiple of 8/16): handled by Pallas' padded edge
    # block + masked store, no wrapper-side jnp.pad or extra HBM pass.
    B2 = 10
    states2 = jax.random.normal(jax.random.PRNGKey(1), (B2, STATE_DIM), dtype=jnp.float32)
    probs2 = jax.block_until_ready(
        discrete_gaussian_policy_forward(states2, params))
    ref2 = _reference_forward(states2, w1, b1, w2, b2, jnp.bfloat16)
    assert probs2.shape == (B2, NUM_ACTIONS)
    assert bool(jnp.all(jnp.abs(probs2.sum(axis=1) - 1.0) < 1e-3))
    assert jnp.allclose(probs2, ref2, atol=2e-3, rtol=2e-3)

    # Multi-step grid + ragged tail (grid=(3,), last block half-masked).
    B3 = 40
    states3 = jax.random.normal(jax.random.PRNGKey(2), (B3, STATE_DIM), dtype=jnp.float32)
    probs3 = jax.block_until_ready(
        discrete_gaussian_policy_forward(states3, params, batch_tile=16))
    ref3 = _reference_forward(states3, w1, b1, w2, b2, jnp.bfloat16)
    assert probs3.shape == (B3, NUM_ACTIONS)
    assert jnp.allclose(probs3, ref3, atol=2e-3, rtol=2e-3)

    # TODO(synk): `sample()` (Categorical sampling / argmax) is host-side glue
    # in the original module, not part of the forward hot path; not kernelized.
    print("KERNEL_OK")
</pallas_src>

<mosaic_0001>
module attributes {stable_mosaic.version = 11 : i64} {
  func.func @_policy_kernel(%arg0: i32, %arg1: memref<16x32xf32, #tpu.memory_space<vmem>>, %arg2: memref<32x128xbf16, #tpu.memory_space<vmem>>, %arg3: memref<1x128xf32, #tpu.memory_space<vmem>>, %arg4: memref<128x128xbf16, #tpu.memory_space<vmem>>, %arg5: memref<1x128xf32, #tpu.memory_space<vmem>>, %arg6: memref<16x8xf32, #tpu.memory_space<vmem>>) attributes {dimension_semantics = [#tpu.dimension_semantics<parallel>], iteration_bounds = array<i64: 1>, scalar_prefetch = 0 : i64, scratch_operands = 0 : i64, tpu.core_type = #tpu.core_type<tc>, window_params = [{transform_indices = @transform_0, window_bounds = array<i64: 16, 32>}, {pipeline_mode = #tpu.pipeline_mode<synchronous>, transform_indices = @transform_1, window_bounds = array<i64: 32, 128>}, {pipeline_mode = #tpu.pipeline_mode<synchronous>, transform_indices = @transform_2, window_bounds = array<i64: 1, 128>}, {pipeline_mode = #tpu.pipeline_mode<synchronous>, transform_indices = @transform_3, window_bounds = array<i64: 128, 128>}, {pipeline_mode = #tpu.pipeline_mode<synchronous>, transform_indices = @transform_4, window_bounds = array<i64: 1, 128>}, {transform_indices = @transform_5, window_bounds = array<i64: 16, 8>}]} {
    %c0 = arith.constant 0 : index
    %c0_0 = arith.constant 0 : index
    %0 = vector.load %arg1[%c0, %c0_0] : memref<16x32xf32, #tpu.memory_space<vmem>>, vector<16x32xf32>
    %1 = arith.truncf %0 : vector<16x32xf32> to vector<16x32xbf16>
    %c0_1 = arith.constant 0 : index
    %c0_2 = arith.constant 0 : index
    %2 = vector.load %arg2[%c0_1, %c0_2] : memref<32x128xbf16, #tpu.memory_space<vmem>>, vector<32x128xbf16>
    %cst = arith.constant dense<0.000000e+00> : vector<16x128xf32>
    %3 = tpu.matmul %1, %2, %cst {dimension_numbers = #tpu.dot_dimension_numbers<[1], [0], [0], [1], [0, 0, 1, 1], [], []>} : vector<16x32xbf16>, vector<32x128xbf16>, vector<16x128xf32> -> vector<16x128xf32>
    %c0_3 = arith.constant 0 : index
    %c0_4 = arith.constant 0 : index
    %4 = vector.load %arg3[%c0_3, %c0_4] : memref<1x128xf32, #tpu.memory_space<vmem>>, vector<1x128xf32>
    %5 = vector.broadcast %4 : vector<1x128xf32> to vector<16x128xf32>
    %6 = arith.addf %3, %5 : vector<16x128xf32>
    %cst_5 = arith.constant 0.000000e+00 : f32
    %7 = vector.broadcast %cst_5 : f32 to vector<16x128xf32>
    %8 = arith.maximumf %6, %7 : vector<16x128xf32>
    %9 = arith.truncf %8 : vector<16x128xf32> to vector<16x128xbf16>
    %c0_6 = arith.constant 0 : index
    %c0_7 = arith.constant 0 : index
    %10 = vector.load %arg4[%c0_6, %c0_7] : memref<128x128xbf16, #tpu.memory_space<vmem>>, vector<128x128xbf16>
    %cst_8 = arith.constant dense<0.000000e+00> : vector<16x128xf32>
    %11 = tpu.matmul %9, %10, %cst_8 {dimension_numbers = #tpu.dot_dimension_numbers<[1], [0], [0], [1], [0, 0, 1, 1], [], []>} : vector<16x128xbf16>, vector<128x128xbf16>, vector<16x128xf32> -> vector<16x128xf32>
    %c0_9 = arith.constant 0 : index
    %c0_10 = arith.constant 0 : index
    %12 = vector.load %arg5[%c0_9, %c0_10] : memref<1x128xf32, #tpu.memory_space<vmem>>, vector<1x128xf32>
    %13 = vector.broadcast %12 : vector<1x128xf32> to vector<16x128xf32>
    %14 = arith.addf %11, %13 : vector<16x128xf32>
    %cst_11 = arith.constant dense<0xFF800000> : vector<16xf32>
    %15 = vector.multi_reduction <maximumf>, %14, %cst_11 [1] : vector<16x128xf32> to vector<16xf32>
    %16 = vector.shape_cast %15 : vector<16xf32> to vector<16x1xf32>
    %17 = vector.broadcast %16 : vector<16x1xf32> to vector<16x128xf32>
    %18 = arith.subf %14, %17 : vector<16x128xf32>
    %19 = math.exp %18 : vector<16x128xf32>
    %cst_12 = arith.constant dense<0.000000e+00> : vector<16xf32>
    %20 = vector.multi_reduction <add>, %19, %cst_12 [1] : vector<16x128xf32> to vector<16xf32>
    %21 = vector.shape_cast %20 : vector<16xf32> to vector<16x1xf32>
    %22 = vector.broadcast %21 : vector<16x1xf32> to vector<16x128xf32>
    %23 = arith.divf %19, %22 : vector<16x128xf32>
    %24 = vector.extract_strided_slice %23 {offsets = [0, 0], sizes = [16, 8], strides = [1, 1]} : vector<16x128xf32> to vector<16x8xf32>
    %c0_13 = arith.constant 0 : index
    %c0_14 = arith.constant 0 : index
    %25 = vector.load %arg6[%c0_13, %c0_14] : memref<16x8xf32, #tpu.memory_space<vmem>>, vector<16x8xf32>
    tpu.vector_store %arg6[%c0_13, %c0_14], %24 {strides = array<i32>} : memref<16x8xf32, #tpu.memory_space<vmem>>, vector<16x8xf32>,
    return
  }
  func.func @transform_0(%arg0: i32) -> (i32, i32) {
    %c0_i32 = arith.constant 0 : i32
    %c0_i32_0 = arith.constant 0 : i32
    return %arg0, %c0_i32 : i32, i32
  }
  func.func @transform_1(%arg0: i32) -> (i32, i32) {
    %c0_i32 = arith.constant 0 : i32
    %c0_i32_0 = arith.constant 0 : i32
    %c0_i32_1 = arith.constant 0 : i32
    return %c0_i32, %c0_i32_0 : i32, i32
  }
  func.func @transform_2(%arg0: i32) -> (i32, i32) {
    %c0_i32 = arith.constant 0 : i32
    %c0_i32_0 = arith.constant 0 : i32
    %c0_i32_1 = arith.constant 0 : i32
    return %c0_i32, %c0_i32_0 : i32, i32
  }
  func.func @transform_3(%arg0: i32) -> (i32, i32) {
    %c0_i32 = arith.constant 0 : i32
    %c0_i32_0 = arith.constant 0 : i32
    %c0_i32_1 = arith.constant 0 : i32
    return %c0_i32, %c0_i32_0 : i32, i32
  }
  func.func @transform_4(%arg0: i32) -> (i32, i32) {
    %c0_i32 = arith.constant 0 : i32
    %c0_i32_0 = arith.constant 0 : i32
    %c0_i32_1 = arith.constant 0 : i32
    return %c0_i32, %c0_i32_0 : i32, i32
  }
  func.func @transform_5(%arg0: i32) -> (i32, i32) {
    %c0_i32 = arith.constant 0 : i32
    %c0_i32_0 = arith.constant 0 : i32
    return %arg0, %c0_i32 : i32, i32
  }
}

</mosaic_0001>

<llo_original>
// kernel: tpu_custom_call.1
$region0: #{tpu_custom_call.1}
  #allocation0 [shape = 'u32[]', space=smem, size = 0x4, offset = 0x4, fixed_abs, tag = 'smem constant byte address 0x4 - core index']
  #allocation1 [shape = 'u32[144,128]{1,0:T(1,128)}', space=vmem, size = 0x12000, scoped, tag = 'internal scratch']
  %s0 = inlined_call_operand.hbm [shape: f32[8,32], index: 0, kind: input, shape index: {}]
  %s1 = inlined_call_operand.hbm [shape: bf16[32,128], index: 1, kind: input, shape index: {}]
  %s2 = inlined_call_operand.vmem [shape: f32[1,128], index: 2, kind: input, shape index: {}]
  %s3 = inlined_call_operand.hbm [shape: bf16[128,128], index: 3, kind: input, shape index: {}]
  %s4 = inlined_call_operand.vmem [shape: f32[1,128], index: 4, kind: input, shape index: {}]
  %s5 = inlined_call_operand.hbm [shape: f32[8,8], index: 5, kind: output, shape index: {}]
  %s6 = sld [smem:[#allocation0]]
  $region42: #{tpu_custom_call.1} parent=0
    _
  %s8 = ssub.s32 1, %s6
  %s9 = scalar_select 0, %s8, %s6
  $region1: #{tpu_custom_call.1} parent=0
    #allocation2 [shape = 'u8[8192]{0}', space=vmem, size = 0x2000, scoped, tag = 'input window, operand 0, single buffered']
    #allocation3 [shape = 's32[1]{0}', space=sflag, size = 0x4, scoped, tag = 'scoped memory for tpu_custom_call.1']
    #allocation4 [shape = 's32[1]{0}', space=sflag, size = 0x4, scoped, tag = 'scoped memory for tpu_custom_call.1']
    #allocation5 [shape = 'u8[8192]{0}', space=vmem, size = 0x2000, scoped, tag = 'input window, operand 1, single buffered']
    #allocation6 [shape = 's32[1]{0}', space=sflag, size = 0x4, scoped, tag = 'scoped memory for tpu_custom_call.1']
    #allocation7 [shape = 'u8[32768]{0}', space=vmem, size = 0x8000, scoped, tag = 'input window, operand 3, single buffered']
    #allocation8 [shape = 'u8[8192]{0}', space=vmem, size = 0x2000, scoped, tag = 'output window, operand 0, single buffered']
    %10 = vsyncpa [#allocation3], 0
    %11 = vsyncpa [#allocation6], 0
    %12 = vsyncpa [#allocation4], 0
    // Predicated region
    $region2: #{tpu_custom_call.1} parent=1 // pred_check
      _
    $region3: #{tpu_custom_call.1} parent=1 // pred_check_branch
      %14 = sbr.rel (0) target = $region5
    $region4: #{tpu_custom_call.1} parent=1 // pred_region
      %s16 = ssub.s32 256, 128
      %17 = vsyncadd [#allocation3], %s16
      %s18 = sshll.u32 [#allocation2], 4
      %s19 = int_to_ptr.vmem [resolvable:$true] %s18
      %24 = dma.hbm_to_vmem [thread:$0]  %s0, 128, %s19, [#allocation3], 128, 128, 8
    $region5: #{tpu_custom_call.1} parent=1 // pred_fallthru
      _
    // Predicated region
    $region6: #{tpu_custom_call.1} parent=1 // pred_check
      _
    $region7: #{tpu_custom_call.1} parent=1 // pred_check_branch
      %26 = sbr.rel (0) target = $region9
    $region8: #{tpu_custom_call.1} parent=1 // pred_region
      %s28 = ssub.s32 256, 256
      %29 = vsyncadd [#allocation6], %s28
      %s30 = sshll.u32 [#allocation5], 4
      %s31 = int_to_ptr.vmem [resolvable:$true] %s30
      %36 = dma.hbm_to_vmem [thread:$0]  %s1, 256, %s31, [#allocation6], 64, 64, 4
    $region9: #{tpu_custom_call.1} parent=1 // pred_fallthru
      _
    // Predicated region
    $region10: #{tpu_custom_call.1} parent=1 // pred_check
      _
    $region11: #{tpu_custom_call.1} parent=1 // pred_check_branch
      %38 = sbr.rel (0) target = $region13
    $region12: #{tpu_custom_call.1} parent=1 // pred_region
      _
    $region13: #{tpu_custom_call.1} parent=1 // pred_fallthru
      _
    // Predicated region
    $region14: #{tpu_custom_call.1} parent=1 // pred_check
      _
    $region15: #{tpu_custom_call.1} parent=1 // pred_check_branch
      %40 = sbr.rel (0) target = $region17
    $region16: #{tpu_custom_call.1} parent=1 // pred_region
      %s42 = ssub.s32 1024, 1024
      %43 = vsyncadd [#allocation6], %s42
      %s44 = sshll.u32 [#allocation7], 4
      %s45 = int_to_ptr.vmem [resolvable:$true] %s44
      %50 = dma.hbm_to_vmem [thread:$0]  %s3, 1024, %s45, [#allocation6], 64, 64, 4
    $region17: #{tpu_custom_call.1} parent=1 // pred_fallthru
      _
    // Predicated region
    $region18: #{tpu_custom_call.1} parent=1 // pred_check
      _
    $region19: #{tpu_custom_call.1} parent=1 // pred_check_branch
      %52 = sbr.rel (0) target = $region21
    $region20: #{tpu_custom_call.1} parent=1 // pred_region
      _
    $region21: #{tpu_custom_call.1} parent=1 // pred_fallthru
      _
    // Predicated region
    $region22: #{tpu_custom_call.1} parent=1 // pred_check
      _
    $region23: #{tpu_custom_call.1} parent=1 // pred_check_branch
      %54 = sbr.rel (0) target = $region25
    $region24: #{tpu_custom_call.1} parent=1 // pred_region
      %55 = dma.done [#allocation3], 256
    $region25: #{tpu_custom_call.1} parent=1 // pred_fallthru
      _
    // Predicated region
    $region26: #{tpu_custom_call.1} parent=1 // pred_check
      _
    $region27: #{tpu_custom_call.1} parent=1 // pred_check_branch
      %57 = sbr.rel (0) target = $region29
    $region28: #{tpu_custom_call.1} parent=1 // pred_region
      %58 = dma.done [#allocation6], 256
    $region29: #{tpu_custom_call.1} parent=1 // pred_fallthru
      _
    // Predicated region
    $region30: #{tpu_custom_call.1} parent=1 // pred_check
      _
    $region31: #{tpu_custom_call.1} parent=1 // pred_check_branch
      %60 = sbr.rel (0) target = $region33
    $region32: #{tpu_custom_call.1} parent=1 // pred_region
      %61 = dma.done [#allocation6], 1024
    $region33: #{tpu_custom_call.1} parent=1 // pred_fallthru
      _
    %v63 = vld [vmem:[#allocation2] sm:$0xff]
    %v64 = vld [vmem:[#allocation2 + $0x8] sm:$0xff]
    %v65 = vpack.c.bf16 %v64, %v63
    %v66 = vld [vmem:[#allocation5] sm:$0xf]
    %v67 = vld [vmem:[#allocation5 + $0x4] sm:$0xf]
    %v68 = vld [vmem:[#allocation5 + $0x8] sm:$0xf]
    %v69 = vld [vmem:[#allocation5 + $0xc] sm:$0xf]
    %v70 = vld [vmem:[%s2] sm:$0x1]
    %v72 = vlaneseq
    %v73 = vshrl.u32 %v72, 7
    %v74 = vsub.s32 0, %v73
    %v75 = vrot.slane %v70, %v74
    %v81 = vunpack.c.l.b16 %v66
    %v82 = vunpack.c.l.b16 %v67
    %v83 = vunpack.c.l.b16 %v68
    %v84 = vunpack.c.l.b16 %v69
    %v85 = vpack.c.b16 %v82, %v81
    %v86 = vpack.c.b16 %v84, %v83
    %vm89 = vcmask 261120
    %v91 = vsel %vm89, %v65, 0
    %93 = vmatprep.subr.bf16.mxu0 0
    %94 = vmatpush1.bf16.msra.mxu0 0
    %95 = vmatprep.subr.bf16.mxu0 0
    %96 = vmatpush1.bf16.msra.mxu0 0
    %97 = vmatprep.subr.bf16.mxu0 0
    %98 = vmatpush1.bf16.msra.mxu0 0
    %99 = vmatprep.subr.bf16.mxu0 0
    %100 = vmatpush1.bf16.msra.mxu0 0
    %101 = vmatprep.subr.bf16.mxu0 0
    %102 = vmatpush1.bf16.msra.mxu0 0
    %103 = vmatprep.subr.bf16.mxu0 0
    %104 = vmatpush1.bf16.msra.mxu0 0
    %105 = vmatprep.subr.bf16.mxu0 0
    %106 = vmatpush1.bf16.msra.mxu0 %v86
    %107 = vmatprep.subr.bf16.mxu0 0
    %108 = vmatpush1.bf16.msra.mxu0 %v85
    %109 = vmatprep.subr.bf16.mxu0 0
    %110 = vmatpush2.bf16.msra.mxu0 0
    %111 = vmatprep.subr.bf16.mxu0 0
    %112 = vmatpush2.bf16.msra.mxu0 0
    %113 = vmatprep.subr.bf16.mxu0 0
    %114 = vmatpush2.bf16.msra.mxu0 0
    %115 = vmatprep.subr.bf16.mxu0 0
    %116 = vmatpush2.bf16.msra.mxu0 0
    %117 = vmatprep.subr.bf16.mxu0 0
    %118 = vmatpush2.bf16.msra.mxu0 0
    %119 = vmatprep.subr.bf16.mxu0 0
    %120 = vmatpush2.bf16.msra.mxu0 0
    %121 = vmatprep.subr.bf16.mxu0 0
    %122 = vmatpush2.bf16.msra.mxu0 0
    %123 = vmatprep.subr.bf16.mxu0 0
    %124 = vmatpush2.bf16.msra.mxu0 0
    %125 = vmatprep.mubr.bf16.mxu0 0
    %126 = vmatmul.mubr.bf16.gmra.mxu0 %v91
    %v127 = vpop.f32.mrf.mxu0
    %v128 = vadd.f32 %v75, %v127
    %v129 = vpop.f32.mrf.mxu0
    %v130 = vpop.f32.mrf.mxu0
    %v131 = vadd.f32 %v75, %v130
    %v132 = vpop.f32.mrf.mxu0
    %133 = vdwg.mxu0
    %v134 = vmax.f32 %v128, 0.0
    %v135 = vmax.f32 %v131, 0.0
    %v136 = vpack.c.bf16 %v135, %v134
    %v137 = vld [vmem:[#allocation7] sm:$0xf]
    %v138 = vld [vmem:[#allocation7 + $0x4] sm:$0xf]
    %v139 = vld [vmem:[#allocation7 + $0x8] sm:$0xf]
    %v140 = vld [vmem:[#allocation7 + $0xc] sm:$0xf]
    %v141 = vld [vmem:[#allocation7 + $0x10] sm:$0xf]
    %v142 = vld [vmem:[#allocation7 + $0x14] sm:$0xf]
    %v143 = vld [vmem:[#allocation7 + $0x18] sm:$0xf]
    %v144 = vld [vmem:[#allocation7 + $0x1c] sm:$0xf]
    %v145 = vld [vmem:[#allocation7 + $0x20] sm:$0xf]
    %v146 = vld [vmem:[#allocation7 + $0x24] sm:$0xf]
    %v147 = vld [vmem:[#allocation7 + $0x28] sm:$0xf]
    %v148 = vld [vmem:[#allocation7 + $0x2c] sm:$0xf]
    %v149 = vld [vmem:[#allocation7 + $0x30] sm:$0xf]
    %v150 = vld [vmem:[#allocation7 + $0x34] sm:$0xf]
    %v151 = vld [vmem:[#allocation7 + $0x38] sm:$0xf]
    %v152 = vld [vmem:[#allocation7 + $0x3c] sm:$0xf]
    %v153 = vld [vmem:[%s4] sm:$0x1]
    %v155 = vlaneseq
    %v156 = vshrl.u32 %v155, 7
    %v157 = vsub.s32 0, %v156
    %v158 = vrot.slane %v153, %v157
    %v176 = vunpack.c.l.b16 %v137
    %v177 = vunpack.c.l.b16 %v138
    %v178 = vunpack.c.l.b16 %v139
    %v179 = vunpack.c.l.b16 %v140
    %v180 = vunpack.c.l.b16 %v141
    %v181 = vunpack.c.l.b16 %v142
    %v182 = vunpack.c.l.b16 %v143
    %v183 = vunpack.c.l.b16 %v144
    %v184 = vunpack.c.l.b16 %v145
    %v185 = vunpack.c.l.b16 %v146
    %v186 = vunpack.c.l.b16 %v147
    %v187 = vunpack.c.l.b16 %v148
    %v188 = vunpack.c.l.b16 %v149
    %v189 = vunpack.c.l.b16 %v150
    %v190 = vunpack.c.l.b16 %v151
    %v191 = vunpack.c.l.b16 %v152
    %v192 = vpack.c.b16 %v177, %v176
    %v193 = vpack.c.b16 %v179, %v178
    %v194 = vpack.c.b16 %v181, %v180
    %v195 = vpack.c.b16 %v183, %v182
    %v196 = vpack.c.b16 %v185, %v184
    %v197 = vpack.c.b16 %v187, %v186
    %v198 = vpack.c.b16 %v189, %v188
    %v199 = vpack.c.b16 %v191, %v190
    %208 = vmatprep.subr.bf16.mxu0 0
    %209 = vmatpush1.bf16.msra.mxu0 %v199
    %210 = vmatprep.subr.bf16.mxu0 0
    %211 = vmatpush1.bf16.msra.mxu0 %v198
    %212 = vmatprep.subr.bf16.mxu0 0
    %213 = vmatpush1.bf16.msra.mxu0 %v197
    %214 = vmatprep.subr.bf16.mxu0 0
    %215 = vmatpush1.bf16.msra.mxu0 %v196
    %216 = vmatprep.subr.bf16.mxu0 0
    %217 = vmatpush1.bf16.msra.mxu0 %v195
    %218 = vmatprep.subr.bf16.mxu0 0
    %219 = vmatpush1.bf16.msra.mxu0 %v194
    %220 = vmatprep.subr.bf16.mxu0 0
    %221 = vmatpush1.bf16.msra.mxu0 %v193
    %222 = vmatprep.subr.bf16.mxu0 0
    %223 = vmatpush1.bf16.msra.mxu0 %v192
    %224 = vmatprep.subr.bf16.mxu0 0
    %225 = vmatpush2.bf16.msra.mxu0 0
    %226 = vmatprep.subr.bf16.mxu0 0
    %227 = vmatpush2.bf16.msra.mxu0 0
    %228 = vmatprep.subr.bf16.mxu0 0
    %229 = vmatpush2.bf16.msra.mxu0 0
    %230 = vmatprep.subr.bf16.mxu0 0
    %231 = vmatpush2.bf16.msra.mxu0 0
    %232 = vmatprep.subr.bf16.mxu0 0
    %233 = vmatpush2.bf16.msra.mxu0 0
    %234 = vmatprep.subr.bf16.mxu0 0
    %235 = vmatpush2.bf16.msra.mxu0 0
    %236 = vmatprep.subr.bf16.mxu0 0
    %237 = vmatpush2.bf16.msra.mxu0 0
    %238 = vmatprep.subr.bf16.mxu0 0
    %239 = vmatpush2.bf16.msra.mxu0 0
    %240 = vmatprep.mubr.bf16.mxu0 0
    %241 = vmatmul.mubr.bf16.gmra.mxu0 %v136
    %v242 = vpop.f32.mrf.mxu0
    %v243 = vadd.f32 %v158, %v242
    %v244 = vpop.f32.mrf.mxu0
    %v245 = vpop.f32.mrf.mxu0
    %v246 = vadd.f32 %v158, %v245
    %v247 = vpop.f32.mrf.mxu0
    %248 = vdwg.mxu0
    %249 = vmax.xlane.f32.xlu0 %v243
    %v250 = vpop.xlane.xlu0 %249
    %251 = vmax.xlane.f32.xlu0 %v246
    %v252 = vpop.xlane.xlu0 %251
    %v253 = vsub.f32 %v243, %v250
    %v254 = vsub.f32 %v246, %v252
    %v255 = vmul.f32 %v253, 1.442695
    %v256 = vpow.pop %v255
    %v257 = vmul.f32 %v254, 1.442695
    %v258 = vpow.pop %v257
    %259 = vadd.xlane.f32.xlu0 %v256
    %v260 = vpop.xlane.xlu0 %259
    %261 = vadd.xlane.f32.xlu0 %v258
    %v262 = vpop.xlane.xlu0 %261
    %v263 = vrcp.pop %v260
    %v264 = vmul.f32 %v256, %v263
    %v265 = vrcp.pop %v262
    %v266 = vmul.f32 %v258, %v265
    %vm267 = vcmask 64512
    %268 = vst.msk [vmem:[#allocation8] sm:$0xff] %vm267, %v264
    %269 = vst.msk [vmem:[#allocation8 + $0x8] sm:$0xff] %vm267, %v266
    // Predicated region
    $region34: #{tpu_custom_call.1} parent=1 // pred_check
      _
    $region35: #{tpu_custom_call.1} parent=1 // pred_check_branch
      %271 = sbr.rel (0) target = $region37
    $region36: #{tpu_custom_call.1} parent=1 // pred_region
      %s273 = ssub.s32 256, 128
      %274 = vsyncadd [#allocation4], %s273
      %s275 = sshll.u32 [#allocation8], 4
      %s276 = int_to_ptr.vmem [resolvable:$true] %s275
      %281 = dma.vmem_to_hbm [thread:$0]  %s276, 128, %s5, [#allocation4], 128, 128, 8
    $region37: #{tpu_custom_call.1} parent=1 // pred_fallthru
      _
    // Predicated region
    $region38: #{tpu_custom_call.1} parent=1 // pred_check
      _
    $region39: #{tpu_custom_call.1} parent=1 // pred_check_branch
      %283 = sbr.rel (0) target = $region41
    $region40: #{tpu_custom_call.1} parent=1 // pred_region
      %284 = dma.done [#allocation4], 256
    $region41: #{tpu_custom_call.1} parent=1 // pred_fallthru
      _
    %285 = vsyncpa [#allocation3], 1
    %286 = vsyncpa [#allocation6], 1
    %287 = vsyncpa [#allocation4], 1

</llo_original>
